<compile_context>
chip_gen: v7x
topology: tpu7x:2x2x1
jax: 0.10.0
libtpu: 0.0.40
codegen_flags: <defaults>
</compile_context>

<pallas_src>
import functools

import jax
import jax.numpy as jnp
from jax.experimental import pallas as pl
from jax.experimental.pallas import tpu as pltpu

# MXU operand dtype; accumulation is always f32 via preferred_element_type.
MXU_DTYPE = jnp.bfloat16


# ----------------------------------------------------------------------------
# helpers
# ----------------------------------------------------------------------------
def _pick_tile_m(M, target=256):
    # full array if small, otherwise a 256-row tile (multiple of 8); cdiv grid
    # handles a partial trailing block (rows are independent in all kernels).
    return M if M <= target else target


def _pick_tile_n(N, target=512):
    # keep lane dim a multiple of 128 (or the full dim); tile only when large.
    if N <= target or N % 128 != 0:
        return N
    return target


def _compiler_params(dim_sems, block_bytes):
    # double-buffered working set + 2x headroom, clamped below v7x's 64 MiB
    # physical VMEM and never below 32 MiB scoped.
    need = 2 * int(block_bytes)
    limit = min(max(2 * need, 32 << 20), 56 << 20)
    return pltpu.CompilerParams(dimension_semantics=dim_sems,
                                vmem_limit_bytes=limit)


# ----------------------------------------------------------------------------
# Pallas kernels
# ----------------------------------------------------------------------------
def _linear_kernel(x_ref, w_ref, b_ref, o_ref):
    # o = x @ w + b ; bf16 MXU operands, f32 accumulation.
    acc = jnp.dot(x_ref[...].astype(MXU_DTYPE),
                  w_ref[...].astype(MXU_DTYPE),
                  preferred_element_type=jnp.float32)
    o_ref[...] = (acc + b_ref[...].astype(jnp.float32)).astype(o_ref.dtype)


def _norm_pred_kernel(x_ref, g_ref, beta_ref, w_ref, b_ref, o_ref, *, eps):
    # Fused LayerNorm (f32, single-pass stats) + decoder_pred matmul.
    x = x_ref[...].astype(jnp.float32)
    mu = jnp.mean(x, axis=-1, keepdims=True)
    m2 = jnp.mean(x * x, axis=-1, keepdims=True)
    var = m2 - mu * mu
    xhat = (x - mu) * jax.lax.rsqrt(var + eps)
    y = xhat * g_ref[...].astype(jnp.float32) + beta_ref[...].astype(jnp.float32)
    acc = jnp.dot(y.astype(MXU_DTYPE), w_ref[...].astype(MXU_DTYPE),
                  preferred_element_type=jnp.float32)
    o_ref[...] = (acc + b_ref[...].astype(jnp.float32)).astype(o_ref.dtype)


def _unshuffle_add_pos_kernel(gidx_ref, ismask_ref, x_ref, mtok_ref, pos_ref,
                              o_ref):
    # One output row per grid step.  The source row of x was already selected
    # via the data-dependent index_map (scalar-prefetched gather_idx); here we
    # only choose between that row and the mask token, then add pos_embed.
    b = pl.program_id(0)
    j = pl.program_id(1)
    use_mask = ismask_ref[b, j] > 0
    row = jnp.where(use_mask, mtok_ref[...], x_ref[0])        # (1, D)
    o_ref[0] = (row + pos_ref[0]).astype(o_ref.dtype)


# ----------------------------------------------------------------------------
# Pallas wrappers
# ----------------------------------------------------------------------------
def pallas_linear(x2d, w, b):
    """x2d: (M, K), w: (K, N), b: (N,) -> (M, N), tiled over (M, N)."""
    M, K = x2d.shape
    N = w.shape[1]
    tm = _pick_tile_m(M)
    tn = _pick_tile_n(N)
    itemsize = jnp.dtype(x2d.dtype).itemsize
    block_bytes = (tm * K + K * tn + tn + tm * tn) * itemsize
    return pl.pallas_call(
        _linear_kernel,
        out_shape=jax.ShapeDtypeStruct((M, N), x2d.dtype),
        grid=(pl.cdiv(M, tm), pl.cdiv(N, tn)),
        in_specs=[
            pl.BlockSpec((tm, K), lambda i, j: (i, 0)),
            pl.BlockSpec((K, tn), lambda i, j: (0, j)),
            pl.BlockSpec((1, tn), lambda i, j: (0, j)),
        ],
        out_specs=pl.BlockSpec((tm, tn), lambda i, j: (i, j)),
        compiler_params=_compiler_params(("parallel", "parallel"), block_bytes),
    )(x2d, w, b.reshape(1, N))


def pallas_norm_pred(x2d, gamma, beta, w, b, eps=1e-5):
    """layernorm(x2d) @ w + b : (M, D) -> (M, P), tiled over M (K, P whole)."""
    M, D = x2d.shape
    P = w.shape[1]
    tm = _pick_tile_m(M)
    itemsize = jnp.dtype(x2d.dtype).itemsize
    block_bytes = (tm * D + 2 * D + D * P + P + tm * P) * itemsize
    return pl.pallas_call(
        functools.partial(_norm_pred_kernel, eps=eps),
        out_shape=jax.ShapeDtypeStruct((M, P), x2d.dtype),
        grid=(pl.cdiv(M, tm),),
        in_specs=[
            pl.BlockSpec((tm, D), lambda i: (i, 0)),
            pl.BlockSpec((1, D), lambda i: (0, 0)),
            pl.BlockSpec((1, D), lambda i: (0, 0)),
            pl.BlockSpec((D, P), lambda i: (0, 0)),
            pl.BlockSpec((1, P), lambda i: (0, 0)),
        ],
        out_specs=pl.BlockSpec((tm, P), lambda i: (i, 0)),
        compiler_params=_compiler_params(("parallel",), block_bytes),
    )(x2d, gamma.reshape(1, D), beta.reshape(1, D), w, b.reshape(1, P))


def pallas_unshuffle_add_pos(x_embed, mask_token_2d, pos, gather_idx, is_mask):
    """Fused: mask-token fill + ids_restore unshuffle + pos-embed add.

    x_embed: (B, Nvis, D)  embedded visible tokens (cls at row 0)
    pos:     (1, L+1, D)   decoder_pos_embed
    gather_idx / is_mask: (B, L+1) int32, scalar-prefetched to SMEM.
    Output:  (B, L+1, D) = unshuffled tokens + pos_embed.
    """
    B, _, D = x_embed.shape
    Lp1 = pos.shape[1]
    grid_spec = pltpu.PrefetchScalarGridSpec(
        num_scalar_prefetch=2,
        grid=(B, Lp1),
        in_specs=[
            # data-dependent row gather from x_embed via prefetched gather_idx
            pl.BlockSpec((1, 1, D), lambda b, j, gidx, msk: (b, gidx[b, j], 0)),
            pl.BlockSpec((1, D), lambda b, j, gidx, msk: (0, 0)),
            pl.BlockSpec((1, 1, D), lambda b, j, gidx, msk: (0, j, 0)),
        ],
        out_specs=pl.BlockSpec((1, 1, D), lambda b, j, gidx, msk: (b, j, 0)),
    )
    return pl.pallas_call(
        _unshuffle_add_pos_kernel,
        out_shape=jax.ShapeDtypeStruct((B, Lp1, D), x_embed.dtype),
        grid_spec=grid_spec,
        compiler_params=pltpu.CompilerParams(
            dimension_semantics=("parallel", "arbitrary")),
    )(gather_idx, is_mask, x_embed, mask_token_2d, pos)


# ----------------------------------------------------------------------------
# Parameter init (matches the PyTorch module's initialize_weights)
# ----------------------------------------------------------------------------
def _xavier_uniform(key, fan_in, fan_out, dtype=jnp.float32):
    limit = (6.0 / (fan_in + fan_out)) ** 0.5
    return jax.random.uniform(key, (fan_in, fan_out), dtype=dtype,
                              minval=-limit, maxval=limit)


def init_params(key, embed_dim, decoder_embed_dim, pred_dim=None):
    if pred_dim is None:
        pred_dim = embed_dim
    k1, k2, k3 = jax.random.split(key, 3)
    return {
        # weights stored (in, out) so the kernels do x @ w directly
        "embed_w": _xavier_uniform(k1, embed_dim, decoder_embed_dim),
        "embed_b": jnp.zeros((decoder_embed_dim,), jnp.float32),
        "mask_token": 0.02
        * jax.random.normal(k2, (1, 1, decoder_embed_dim), jnp.float32),
        "norm_w": jnp.ones((decoder_embed_dim,), jnp.float32),
        "norm_b": jnp.zeros((decoder_embed_dim,), jnp.float32),
        "pred_w": _xavier_uniform(k3, decoder_embed_dim, pred_dim),
        "pred_b": jnp.zeros((pred_dim,), jnp.float32),
    }


# ----------------------------------------------------------------------------
# Forward pass (semantics of ViTDecoderFeature.forward)
# ----------------------------------------------------------------------------
def vit_decoder_feature_forward(params, x, ids_restore, decoder_pos_embed,
                                decoder_blocks=()):
    B, Nvis, E = x.shape                     # Nvis = visible patches + 1 cls
    D = params["embed_w"].shape[1]
    L = ids_restore.shape[1]                 # total number of patches
    P = params["pred_w"].shape[1]

    # x = self.decoder_embed(x)   (tiled Pallas matmul + bias)
    x = pallas_linear(x.reshape(B * Nvis, E),
                      params["embed_w"], params["embed_b"]).reshape(B, Nvis, D)

    # Build tiny (B, L+1) scalar maps in JAX; the gather itself, the mask-token
    # fill and the +pos_embed all happen in one fused Pallas pass.
    ids = ids_restore.astype(jnp.int32)
    is_vis = ids < (Nvis - 1)                            # token came from x
    row_idx = jnp.where(is_vis, ids + 1, 0)              # +1 to skip cls row
    zcol = jnp.zeros((B, 1), jnp.int32)
    gather_idx = jnp.concatenate([zcol, row_idx], axis=1)            # (B, L+1)
    is_mask = jnp.concatenate([zcol, (~is_vis).astype(jnp.int32)], axis=1)

    x = pallas_unshuffle_add_pos(
        x,
        params["mask_token"].reshape(1, D).astype(x.dtype),
        decoder_pos_embed.astype(x.dtype),
        gather_idx, is_mask)                                         # (B, L+1, D)

    # caller-supplied transformer blocks (applied as-is; empty in the demo)
    for blk in decoder_blocks:
        x = blk(x)

    # decoder_pred(decoder_norm(x)); cls token dropped BEFORE the kernel so we
    # never materialize (or write back) the unused row.
    x_patches = x[:, 1:, :].reshape(B * L, D)
    out = pallas_norm_pred(
        x_patches,
        params["norm_w"], params["norm_b"],
        params["pred_w"], params["pred_b"],
        eps=1e-5,
    )
    return out.reshape(B, L, P)


# ----------------------------------------------------------------------------
# pure-JAX reference (for a loose parity check; bf16 MXU operands -> tolerance)
# ----------------------------------------------------------------------------
def reference_forward(params, x, ids_restore, pos, decoder_blocks=()):
    B, Nvis, _ = x.shape
    D = params["embed_w"].shape[1]
    L = ids_restore.shape[1]
    x = x @ params["embed_w"] + params["embed_b"]
    mask_tokens = jnp.broadcast_to(params["mask_token"], (B, L + 1 - Nvis, D))
    x_ = jnp.concatenate([x[:, 1:, :], mask_tokens], axis=1)
    x_ = jnp.take_along_axis(x_, ids_restore[:, :, None].astype(jnp.int32),
                             axis=1)
    x = jnp.concatenate([x[:, :1, :], x_], axis=1)
    x = x + pos
    for blk in decoder_blocks:
        x = blk(x)
    mu = jnp.mean(x, -1, keepdims=True)
    var = jnp.mean((x - mu) ** 2, -1, keepdims=True)
    y = (x - mu) / jnp.sqrt(var + 1e-5) * params["norm_w"] + params["norm_b"]
    out = y @ params["pred_w"] + params["pred_b"]
    return out[:, 1:, :]


# ----------------------------------------------------------------------------
if __name__ == "__main__":
    key = jax.random.PRNGKey(0)

    # small but lane-aligned config (feature dims multiples of 128)
    B = 2
    embed_dim = 128
    decoder_embed_dim = 128
    pred_dim = embed_dim            # module default: pred_dim = embed_dim
    L = 16                          # total patches
    n_keep = 8                      # visible patches
    Nvis = n_keep + 1               # + cls token

    kp, kx, kpos, kperm0, kperm1 = jax.random.split(key, 5)
    params = init_params(kp, embed_dim, decoder_embed_dim, pred_dim)

    x = jax.random.normal(kx, (B, Nvis, embed_dim), jnp.float32)
    decoder_pos_embed = jax.random.normal(
        kpos, (1, L + 1, decoder_embed_dim), jnp.float32)
    ids_restore = jnp.stack(
        [jax.random.permutation(kperm0, L).astype(jnp.int32),
         jax.random.permutation(kperm1, L).astype(jnp.int32)], axis=0)

    # decoder_blocks is a forward-time argument of the PyTorch module; the demo
    # uses an empty list (any JAX callables (B,N,D)->(B,N,D) would work).
    decoder_blocks = []

    out = vit_decoder_feature_forward(
        params, x, ids_restore, decoder_pos_embed, decoder_blocks)
    out = jax.block_until_ready(out)
    assert out.shape == (B, L, pred_dim), out.shape

    ref = reference_forward(params, x, ids_restore, decoder_pos_embed,
                            decoder_blocks)
    max_err = float(jnp.max(jnp.abs(out - ref)))
    assert max_err < 1e-1, f"max abs error vs reference too large: {max_err}"

    print("KERNEL_OK")
</pallas_src>

<mosaic_0001>
module attributes {stable_mosaic.version = 11 : i64} {
  func.func @_linear_kernel(%arg0: i32, %arg1: i32, %arg2: memref<18x128xf32, #tpu.memory_space<vmem>>, %arg3: memref<128x128xf32, #tpu.memory_space<vmem>>, %arg4: memref<1x128xf32, #tpu.memory_space<vmem>>, %arg5: memref<18x128xf32, #tpu.memory_space<vmem>>) attributes {dimension_semantics = [#tpu.dimension_semantics<parallel>, #tpu.dimension_semantics<parallel>], iteration_bounds = array<i64: 1, 1>, scalar_prefetch = 0 : i64, scratch_operands = 0 : i64, tpu.core_type = #tpu.core_type<tc>, window_params = [{transform_indices = @transform_0, window_bounds = array<i64: 18, 128>}, {transform_indices = @transform_1, window_bounds = array<i64: 128, 128>}, {transform_indices = @transform_2, window_bounds = array<i64: 1, 128>}, {transform_indices = @transform_3, window_bounds = array<i64: 18, 128>}]} {
    %c0 = arith.constant 0 : index
    %c0_0 = arith.constant 0 : index
    %0 = vector.load %arg2[%c0, %c0_0] : memref<18x128xf32, #tpu.memory_space<vmem>>, vector<18x128xf32>
    %1 = arith.truncf %0 : vector<18x128xf32> to vector<18x128xbf16>
    %c0_1 = arith.constant 0 : index
    %c0_2 = arith.constant 0 : index
    %2 = vector.load %arg3[%c0_1, %c0_2] : memref<128x128xf32, #tpu.memory_space<vmem>>, vector<128x128xf32>
    %3 = arith.truncf %2 : vector<128x128xf32> to vector<128x128xbf16>
    %cst = arith.constant dense<0.000000e+00> : vector<18x128xf32>
    %4 = tpu.matmul %1, %3, %cst {dimension_numbers = #tpu.dot_dimension_numbers<[1], [0], [0], [1], [0, 0, 1, 1], [], []>} : vector<18x128xbf16>, vector<128x128xbf16>, vector<18x128xf32> -> vector<18x128xf32>
    %c0_3 = arith.constant 0 : index
    %c0_4 = arith.constant 0 : index
    %5 = vector.load %arg4[%c0_3, %c0_4] : memref<1x128xf32, #tpu.memory_space<vmem>>, vector<1x128xf32>
    %6 = vector.broadcast %5 : vector<1x128xf32> to vector<18x128xf32>
    %7 = arith.addf %4, %6 : vector<18x128xf32>
    %c0_5 = arith.constant 0 : index
    %c0_6 = arith.constant 0 : index
    %8 = vector.load %arg5[%c0_5, %c0_6] : memref<18x128xf32, #tpu.memory_space<vmem>>, vector<18x128xf32>
    tpu.vector_store %arg5[%c0_5, %c0_6], %7 {strides = array<i32>} : memref<18x128xf32, #tpu.memory_space<vmem>>, vector<18x128xf32>,
    return
  }
  func.func @transform_0(%arg0: i32, %arg1: i32) -> (i32, i32) {
    %c0_i32 = arith.constant 0 : i32
    %c0_i32_0 = arith.constant 0 : i32
    return %arg0, %c0_i32 : i32, i32
  }
  func.func @transform_1(%arg0: i32, %arg1: i32) -> (i32, i32) {
    %c0_i32 = arith.constant 0 : i32
    %c0_i32_0 = arith.constant 0 : i32
    return %c0_i32, %arg1 : i32, i32
  }
  func.func @transform_2(%arg0: i32, %arg1: i32) -> (i32, i32) {
    %c0_i32 = arith.constant 0 : i32
    %c0_i32_0 = arith.constant 0 : i32
    return %c0_i32, %arg1 : i32, i32
  }
  func.func @transform_3(%arg0: i32, %arg1: i32) -> (i32, i32) {
    %c0_i32 = arith.constant 0 : i32
    return %arg0, %arg1 : i32, i32
  }
}

</mosaic_0001>

<llo_original>
// kernel: tpu_custom_call.1
$region0: #{tpu_custom_call.1}
  #allocation0 [shape = 'u32[]', space=smem, size = 0x4, offset = 0x4, fixed_abs, tag = 'smem constant byte address 0x4 - core index']
  #allocation1 [shape = 'u32[144,128]{1,0:T(1,128)}', space=vmem, size = 0x12000, scoped, tag = 'internal scratch']
  %s0 = inlined_call_operand.hbm [shape: f32[18,128], index: 0, kind: input, shape index: {}]
  %s1 = inlined_call_operand.hbm [shape: f32[128,128], index: 1, kind: input, shape index: {}]
  %s2 = inlined_call_operand.vmem [shape: f32[1,128], index: 2, kind: input, shape index: {}]
  %s3 = inlined_call_operand.hbm [shape: f32[18,128], index: 3, kind: output, shape index: {}]
  %s4 = sld [smem:[#allocation0]]
  $region30: #{tpu_custom_call.1} parent=0
    _
  %s6 = ssub.s32 1, %s4
  %s7 = scalar_select 0, %s6, %s4
  $region1: #{tpu_custom_call.1} parent=0
    #allocation2 [shape = 'u8[12288]{0}', space=vmem, size = 0x3000, scoped, tag = 'input window, operand 0, single buffered']
    #allocation3 [shape = 's32[1]{0}', space=sflag, size = 0x4, scoped, tag = 'scoped memory for tpu_custom_call.1']
    #allocation4 [shape = 's32[1]{0}', space=sflag, size = 0x4, scoped, tag = 'scoped memory for tpu_custom_call.1']
    #allocation5 [shape = 'u8[65536]{0}', space=vmem, size = 0x10000, scoped, tag = 'input window, operand 1, single buffered']
    #allocation6 [shape = 's32[1]{0}', space=sflag, size = 0x4, scoped, tag = 'scoped memory for tpu_custom_call.1']
    #allocation7 [shape = 'u8[12288]{0}', space=vmem, size = 0x3000, scoped, tag = 'output window, operand 0, single buffered']
    %8 = vsyncpa [#allocation3], 0
    %9 = vsyncpa [#allocation6], 0
    %10 = vsyncpa [#allocation4], 0
    // Predicated region
    $region2: #{tpu_custom_call.1} parent=1 // pred_check
      _
    $region3: #{tpu_custom_call.1} parent=1 // pred_check_branch
      %12 = sbr.rel (0) target = $region5
    $region4: #{tpu_custom_call.1} parent=1 // pred_region
      %s14 = ssub.s32 384, 384
      %15 = vsyncadd [#allocation3], %s14
      %s16 = sshll.u32 [#allocation2], 4
      %s17 = int_to_ptr.vmem [resolvable:$true] %s16
      %22 = dma.hbm_to_vmem [thread:$0]  %s0, 384, %s17, [#allocation3], 128, 128, 8
    $region5: #{tpu_custom_call.1} parent=1 // pred_fallthru
      _
    // Predicated region
    $region6: #{tpu_custom_call.1} parent=1 // pred_check
      _
    $region7: #{tpu_custom_call.1} parent=1 // pred_check_branch
      %24 = sbr.rel (0) target = $region9
    $region8: #{tpu_custom_call.1} parent=1 // pred_region
      %s26 = ssub.s32 2048, 2048
      %27 = vsyncadd [#allocation6], %s26
      %s28 = sshll.u32 [#allocation5], 4
      %s29 = int_to_ptr.vmem [resolvable:$true] %s28
      %34 = dma.hbm_to_vmem [thread:$0]  %s1, 2048, %s29, [#allocation6], 128, 128, 8
    $region9: #{tpu_custom_call.1} parent=1 // pred_fallthru
      _
    // Predicated region
    $region10: #{tpu_custom_call.1} parent=1 // pred_check
      _
    $region11: #{tpu_custom_call.1} parent=1 // pred_check_branch
      %36 = sbr.rel (0) target = $region13
    $region12: #{tpu_custom_call.1} parent=1 // pred_region
      _
    $region13: #{tpu_custom_call.1} parent=1 // pred_fallthru
      _
    // Predicated region
    $region14: #{tpu_custom_call.1} parent=1 // pred_check
      _
    $region15: #{tpu_custom_call.1} parent=1 // pred_check_branch
      %38 = sbr.rel (0) target = $region17
    $region16: #{tpu_custom_call.1} parent=1 // pred_region
      %39 = dma.done [#allocation3], 384
    $region17: #{tpu_custom_call.1} parent=1 // pred_fallthru
      _
    // Predicated region
    $region18: #{tpu_custom_call.1} parent=1 // pred_check
      _
    $region19: #{tpu_custom_call.1} parent=1 // pred_check_branch
      %41 = sbr.rel (0) target = $region21
    $region20: #{tpu_custom_call.1} parent=1 // pred_region
      %42 = dma.done [#allocation6], 2048
    $region21: #{tpu_custom_call.1} parent=1 // pred_fallthru
      _
    %v44 = vld [vmem:[#allocation2] sm:$0xff]
    %v45 = vld [vmem:[#allocation2 + $0x8] sm:$0xff]
    %v46 = vld [vmem:[#allocation2 + $0x10] sm:$0x3]
    %v47 = vpack.c.bf16 %v45, %v44
    %v48 = vpack.c.bf16 %v46, %v46
    %v49 = vld [vmem:[#allocation5] sm:$0xff]
    %v50 = vld [vmem:[#allocation5 + $0x8] sm:$0xff]
    %v51 = vld [vmem:[#allocation5 + $0x10] sm:$0xff]
    %v52 = vld [vmem:[#allocation5 + $0x18] sm:$0xff]
    %v53 = vld [vmem:[#allocation5 + $0x20] sm:$0xff]
    %v54 = vld [vmem:[#allocation5 + $0x28] sm:$0xff]
    %v55 = vld [vmem:[#allocation5 + $0x30] sm:$0xff]
    %v56 = vld [vmem:[#allocation5 + $0x38] sm:$0xff]
    %v57 = vld [vmem:[#allocation5 + $0x40] sm:$0xff]
    %v58 = vld [vmem:[#allocation5 + $0x48] sm:$0xff]
    %v59 = vld [vmem:[#allocation5 + $0x50] sm:$0xff]
    %v60 = vld [vmem:[#allocation5 + $0x58] sm:$0xff]
    %v61 = vld [vmem:[#allocation5 + $0x60] sm:$0xff]
    %v62 = vld [vmem:[#allocation5 + $0x68] sm:$0xff]
    %v63 = vld [vmem:[#allocation5 + $0x70] sm:$0xff]
    %v64 = vld [vmem:[#allocation5 + $0x78] sm:$0xff]
    %v65 = vpack.c.bf16 %v50, %v49
    %v66 = vpack.c.bf16 %v52, %v51
    %v67 = vpack.c.bf16 %v54, %v53
    %v68 = vpack.c.bf16 %v56, %v55
    %v69 = vpack.c.bf16 %v58, %v57
    %v70 = vpack.c.bf16 %v60, %v59
    %v71 = vpack.c.bf16 %v62, %v61
    %v72 = vpack.c.bf16 %v64, %v63
    %v73 = vld [vmem:[%s2] sm:$0x1]
    %v75 = vlaneseq
    %v76 = vshrl.u32 %v75, 7
    %v77 = vsub.s32 0, %v76
    %v78 = vrot.slane %v73, %v77
    %80 = vmatprep.subr.bf16.mxu0 0
    %81 = vmatpush1.bf16.msra.mxu0 %v65
    %82 = vmatprep.subr.bf16.mxu0 0
    %83 = vmatpush1.bf16.msra.mxu0 %v66
    %84 = vmatprep.subr.bf16.mxu0 0
    %85 = vmatpush1.bf16.msra.mxu0 %v67
    %86 = vmatprep.subr.bf16.mxu0 0
    %87 = vmatpush1.bf16.msra.mxu0 %v68
    %88 = vmatprep.subr.bf16.mxu0 0
    %89 = vmatpush1.bf16.msra.mxu0 %v69
    %90 = vmatprep.subr.bf16.mxu0 0
    %91 = vmatpush1.bf16.msra.mxu0 %v70
    %92 = vmatprep.subr.bf16.mxu0 0
    %93 = vmatpush1.bf16.msra.mxu0 %v71
    %94 = vmatprep.subr.bf16.mxu0 0
    %95 = vmatpush1.bf16.msra.mxu0 %v72
    %96 = vmatprep.subr.bf16.mxu0 0
    %97 = vmatpush1.bf16.msra.mxu0 0
    %98 = vmatprep.subr.bf16.mxu0 0
    %99 = vmatpush1.bf16.msra.mxu0 0
    %100 = vmatprep.subr.bf16.mxu0 0
    %101 = vmatpush1.bf16.msra.mxu0 0
    %102 = vmatprep.subr.bf16.mxu0 0
    %103 = vmatpush1.bf16.msra.mxu0 0
    %104 = vmatprep.subr.bf16.mxu0 0
    %105 = vmatpush1.bf16.msra.mxu0 0
    %106 = vmatprep.subr.bf16.mxu0 0
    %107 = vmatpush1.bf16.msra.mxu0 0
    %108 = vmatprep.subr.bf16.mxu0 0
    %109 = vmatpush1.bf16.msra.mxu0 0
    %110 = vmatprep.subr.bf16.mxu0 0
    %111 = vmatpush1.bf16.msra.mxu0 0
    %112 = vmatprep.mubr.bf16.mxu0 0
    %113 = vmatmul.mubr.bf16.gmra.mrb[0].mxu0 %v47
    %v114 = vpop.f32.mrb[0].mxu0
    %v115 = vadd.f32 %v78, %v114
    %v116 = vpop.f32.mrb[0].mxu0
    %v117 = vpop.f32.mrb[0].mxu0
    %v118 = vadd.f32 %v78, %v117
    %v119 = vpop.f32.mrb[0].mxu0
    %120 = vmatprep.mubr.bf16.mxu0 0
    %121 = vmatmul.mubr.bf16.gmra.mrb[0].mxu0 %v48
    %v122 = vpop.f32.mrb[0].mxu0
    %v123 = vadd.f32 %v78, %v122
    %v124 = vpop.f32.mrb[0].mxu0
    %v125 = vpop.f32.mrb[0].mxu0
    %v126 = vpop.f32.mrb[0].mxu0
    %127 = vdwg.mxu0
    %128 = vst [vmem:[#allocation7] sm:$0xff] %v115
    %129 = vst [vmem:[#allocation7 + $0x8] sm:$0xff] %v118
    %130 = vst [vmem:[#allocation7 + $0x10] sm:$0x3] %v123
    // Predicated region
    $region22: #{tpu_custom_call.1} parent=1 // pred_check
      _
    $region23: #{tpu_custom_call.1} parent=1 // pred_check_branch
      %132 = sbr.rel (0) target = $region25
    $region24: #{tpu_custom_call.1} parent=1 // pred_region
      %s134 = ssub.s32 384, 384
      %135 = vsyncadd [#allocation4], %s134
      %s136 = sshll.u32 [#allocation7], 4
      %s137 = int_to_ptr.vmem [resolvable:$true] %s136
      %142 = dma.vmem_to_hbm [thread:$0]  %s137, 384, %s3, [#allocation4], 128, 128, 8
    $region25: #{tpu_custom_call.1} parent=1 // pred_fallthru
      _
    // Predicated region
    $region26: #{tpu_custom_call.1} parent=1 // pred_check
      _
    $region27: #{tpu_custom_call.1} parent=1 // pred_check_branch
      %144 = sbr.rel (0) target = $region29
    $region28: #{tpu_custom_call.1} parent=1 // pred_region
      %145 = dma.done [#allocation4], 384
    $region29: #{tpu_custom_call.1} parent=1 // pred_fallthru
      _
    %146 = vsyncpa [#allocation3], 1
    %147 = vsyncpa [#allocation6], 1
    %148 = vsyncpa [#allocation4], 1

</llo_original>
